<compile_context>
chip_gen: v7x
topology: tpu7x:2x2x1
jax: 0.10.0
libtpu: 0.0.40
codegen_flags: <defaults>
</compile_context>

<pallas_src>
import functools

import jax
import jax.numpy as jnp
import numpy as np
from jax.experimental import pallas as pl
from jax.experimental.pallas import tpu as pltpu

LANES = 128                      # vreg lane width
ROW_ALIGN = 16                   # sublane alignment (valid for f32 and bf16 packing)
BLOCK_BYTES_PER_INPUT = 4 << 20  # 4 MiB per input per pipeline buffer
VMEM_LIMIT_BYTES = 32 << 20      # explicit scoped-VMEM budget (safe on v5e/v6e/v7x)


def _round_up(x: int, m: int) -> int:
    return ((x + m - 1) // m) * m


def _partial_sq_sum_kernel(res_ref, ref_ref, out_ref, *,
                           rows_valid: int, block_rows: int, mask_rows: bool):
    """Per-block partial sum of squared differences -> lane-dense (1, 128) row."""
    # astype is a no-op for f32 inputs; gives the f32 accumulate path for bf16.
    d = res_ref[...].astype(jnp.float32) - ref_ref[...].astype(jnp.float32)
    sq = d * d

    if not mask_rows:
        out_ref[...] = jnp.sum(sq, axis=0, keepdims=True)
    else:
        i = pl.program_id(0)
        last = pl.num_programs(0) - 1

        @pl.when(i != last)
        def _unmasked():
            out_ref[...] = jnp.sum(sq, axis=0, keepdims=True)

        @pl.when(i == last)
        def _masked():
            # Rows at/after `rows_valid` hold unspecified pad data; zero them
            # after the square (select, so NaN/Inf garbage is discarded).
            row_ids = i * block_rows + jax.lax.broadcasted_iota(
                jnp.int32, sq.shape, 0)
            out_ref[...] = jnp.sum(jnp.where(row_ids < rows_valid, sq, 0.0),
                                   axis=0, keepdims=True)


def mse_loss(res: jax.Array, ref: jax.Array) -> jax.Array:
    """Equivalent of torch.nn.functional.mse_loss(res, ref) (mean reduction)."""
    assert res.shape == ref.shape, "mse_loss: shapes must match"
    n_elems = res.size
    if n_elems == 0:
        return jnp.float32(jnp.nan)  # matches torch: mean over empty -> nan

    res_flat = res.reshape(-1)
    ref_flat = ref.reshape(-1)
    rows = n_elems // LANES
    rem = n_elems % LANES

    total = jnp.float32(0.0)

    # Sub-lane-width tail (< 128 elements): plain JAX, negligible cost.
    if rem:
        tr = res_flat[rows * LANES:].astype(jnp.float32)
        tf = ref_flat[rows * LANES:].astype(jnp.float32)
        total = total + jnp.sum((tr - tf) ** 2)

    if rows > 0:
        if rem:
            # TODO(synk): for non-multiple-of-128 sizes this prefix slice is a
            # hidden XLA copy of the aligned prefix before the custom call;
            # acceptable correctness-preserving fallback for ragged shapes.
            res2d = res_flat[:rows * LANES].reshape(rows, LANES)
            ref2d = ref_flat[:rows * LANES].reshape(rows, LANES)
        else:
            # Contiguous flat -> (rows, 128) is a free, layout-preserving view.
            res2d = res_flat.reshape(rows, LANES)
            ref2d = ref_flat.reshape(rows, LANES)

        itemsize = jnp.dtype(res.dtype).itemsize
        # Dtype-aware block sizing: fixed byte budget per input per buffer.
        max_block_rows = max(ROW_ALIGN, BLOCK_BYTES_PER_INPUT // (LANES * itemsize))
        if rows > 2 * ROW_ALIGN:
            # Guarantee >= 2 (balanced) grid steps so both v7x TensorCores are
            # used via the "parallel" grid axis; no effect on v5e/v6e.
            block_rows = min(max_block_rows, _round_up(pl.cdiv(rows, 2), ROW_ALIGN))
        else:
            block_rows = _round_up(rows, ROW_ALIGN)
        n_blocks = pl.cdiv(rows, block_rows)
        ragged = (rows % block_rows) != 0  # last block needs in-kernel masking

        kernel = functools.partial(
            _partial_sq_sum_kernel,
            rows_valid=rows,
            block_rows=block_rows,
            mask_rows=ragged,
        )

        partials = pl.pallas_call(
            kernel,
            out_shape=jax.ShapeDtypeStruct((n_blocks, LANES), jnp.float32),
            grid_spec=pltpu.PrefetchScalarGridSpec(
                num_scalar_prefetch=0,
                grid=(n_blocks,),
                in_specs=[
                    pl.BlockSpec((block_rows, LANES), lambda i: (i, 0)),
                    pl.BlockSpec((block_rows, LANES), lambda i: (i, 0)),
                ],
                out_specs=pl.BlockSpec((1, LANES), lambda i: (i, 0)),
            ),
            compiler_params=pltpu.CompilerParams(
                dimension_semantics=("parallel",),  # independent blocks
                vmem_limit_bytes=VMEM_LIMIT_BYTES,
            ),
            cost_estimate=pl.CostEstimate(
                flops=3 * rows * LANES,
                transcendentals=0,
                bytes_accessed=2 * rows * LANES * itemsize + 4 * n_blocks * LANES,
            ),
        )(res2d, ref2d)

        total = total + jnp.sum(partials)

    return (total / jnp.float32(n_elems)).astype(jnp.float32)


def _ref_mse(a, b) -> float:
    a64 = np.asarray(a, dtype=np.float64)
    b64 = np.asarray(b, dtype=np.float64)
    return float(np.mean((a64 - b64) ** 2))


if __name__ == "__main__":
    mse = jax.jit(mse_loss)
    key = jax.random.PRNGKey(0)

    test_shapes = [
        (2, 4, 16, 16),    # 2048 elems: single-block lane-aligned path
        (5, 77),           # 385 elems: ragged fallback + <128-elem tail
        (3, 1000, 128),    # 384000 elems: 2 blocks, ragged (masked) last block
        (256, 4096),       # 1M elems: 2 balanced blocks, clean aligned path
    ]

    for idx, shape in enumerate(test_shapes):
        k1, k2 = jax.random.split(jax.random.fold_in(key, idx))
        res = jax.random.normal(k1, shape, dtype=jnp.float32)
        ref = jax.random.normal(k2, shape, dtype=jnp.float32)

        out = mse(res, ref)
        jax.block_until_ready(out)

        expected = _ref_mse(res, ref)
        assert abs(float(out) - expected) <= 1e-4 * abs(expected) + 1e-6, (
            shape, float(out), expected)

    print("KERNEL_OK")
</pallas_src>

<mosaic_0001>
module attributes {stable_mosaic.version = 11 : i64} {
  func.func @_partial_sq_sum_kernel(%arg0: i32, %arg1: memref<16x128xf32, #tpu.memory_space<vmem>>, %arg2: memref<16x128xf32, #tpu.memory_space<vmem>>, %arg3: memref<1x128xf32, #tpu.memory_space<vmem>>) attributes {dimension_semantics = [#tpu.dimension_semantics<parallel>], iteration_bounds = array<i64: 1>, scalar_prefetch = 0 : i64, scratch_operands = 0 : i64, tpu.core_type = #tpu.core_type<tc>, window_params = [{transform_indices = @transform_0, window_bounds = array<i64: 16, 128>}, {transform_indices = @transform_1, window_bounds = array<i64: 16, 128>}, {transform_indices = @transform_2, window_bounds = array<i64: 1, 128>}]} {
    %c0 = arith.constant 0 : index
    %c0_0 = arith.constant 0 : index
    %0 = vector.load %arg1[%c0, %c0_0] : memref<16x128xf32, #tpu.memory_space<vmem>>, vector<16x128xf32>
    %c0_1 = arith.constant 0 : index
    %c0_2 = arith.constant 0 : index
    %1 = vector.load %arg2[%c0_1, %c0_2] : memref<16x128xf32, #tpu.memory_space<vmem>>, vector<16x128xf32>
    %2 = arith.subf %0, %1 : vector<16x128xf32>
    %3 = arith.mulf %2, %2 : vector<16x128xf32>
    %cst = arith.constant dense<0.000000e+00> : vector<128xf32>
    %4 = vector.multi_reduction <add>, %3, %cst [0] : vector<16x128xf32> to vector<128xf32>
    %5 = vector.shape_cast %4 : vector<128xf32> to vector<1x128xf32>
    %c0_3 = arith.constant 0 : index
    %c0_4 = arith.constant 0 : index
    %6 = vector.load %arg3[%c0_3, %c0_4] : memref<1x128xf32, #tpu.memory_space<vmem>>, vector<1x128xf32>
    tpu.vector_store %arg3[%c0_3, %c0_4], %5 {strides = array<i32>} : memref<1x128xf32, #tpu.memory_space<vmem>>, vector<1x128xf32>,
    return
  }
  func.func @transform_0(%arg0: i32) -> (i32, i32) {
    %c0_i32 = arith.constant 0 : i32
    %c0_i32_0 = arith.constant 0 : i32
    return %arg0, %c0_i32 : i32, i32
  }
  func.func @transform_1(%arg0: i32) -> (i32, i32) {
    %c0_i32 = arith.constant 0 : i32
    %c0_i32_0 = arith.constant 0 : i32
    return %arg0, %c0_i32 : i32, i32
  }
  func.func @transform_2(%arg0: i32) -> (i32, i32) {
    %c0_i32 = arith.constant 0 : i32
    %c0_i32_0 = arith.constant 0 : i32
    return %arg0, %c0_i32 : i32, i32
  }
}

</mosaic_0001>

<llo_original>
// kernel: mse_loss.1
$region0: #{mse_loss.1}
  #allocation0 [shape = 'u32[]', space=smem, size = 0x4, offset = 0x4, fixed_abs, tag = 'smem constant byte address 0x4 - core index']
  #allocation1 [shape = 'u32[144,128]{1,0:T(1,128)}', space=vmem, size = 0x12000, scoped, tag = 'internal scratch']
  %s0 = inlined_call_operand.vmem [shape: f32[16,128], index: 0, kind: input, shape index: {}]
  %s1 = inlined_call_operand.vmem [shape: f32[16,128], index: 1, kind: input, shape index: {}]
  %s2 = inlined_call_operand.vmem [shape: f32[1,128], index: 2, kind: output, shape index: {}]
  %s3 = sld [smem:[#allocation0]]
  $region18: #{mse_loss.1} parent=0
    _
  %s5 = ssub.s32 1, %s3
  %s6 = scalar_select 0, %s5, %s3
  // Predicated region
  $region2: #{mse_loss.1} parent=0 // pred_check
    _
  $region3: #{mse_loss.1} parent=0 // pred_check_branch
    %8 = sbr.rel (0) target = $region5
  $region4: #{mse_loss.1} parent=0 // pred_region
    _
  $region5: #{mse_loss.1} parent=0 // pred_fallthru
    _
  // Predicated region
  $region6: #{mse_loss.1} parent=0 // pred_check
    _
  $region7: #{mse_loss.1} parent=0 // pred_check_branch
    %10 = sbr.rel (0) target = $region9
  $region8: #{mse_loss.1} parent=0 // pred_region
    _
  $region9: #{mse_loss.1} parent=0 // pred_fallthru
    _
  %v11 = vld [vmem:[%s0] sm:$0xff]
  %v12 = vld [vmem:[%s0 + $0x8] sm:$0xff]
  %v13 = vld [vmem:[%s1] sm:$0xff]
  %v14 = vld [vmem:[%s1 + $0x8] sm:$0xff]
  %v15 = vsub.f32 %v11, %v13
  %v16 = vsub.f32 %v12, %v14
  %v17 = vmul.f32 %v15, %v15
  %v18 = vmul.f32 %v16, %v16
  %v19 = vadd.f32 %v17, %v18
  %v20 = vrot.slane %v19, 4
  %v21 = vadd.f32 %v19, %v20
  %v22 = vrot.slane %v21, 2
  %v23 = vadd.f32 %v21, %v22
  %v24 = vrot.slane %v23, 1
  %v25 = vadd.f32 %v23, %v24
  %26 = vst [vmem:[%s2] sm:$0x1] %v25
  // Predicated region
  $region10: #{mse_loss.1} parent=0 // pred_check
    _
  $region11: #{mse_loss.1} parent=0 // pred_check_branch
    %28 = sbr.rel (0) target = $region13
  $region12: #{mse_loss.1} parent=0 // pred_region
    _
  $region13: #{mse_loss.1} parent=0 // pred_fallthru
    _
  // Predicated region
  $region14: #{mse_loss.1} parent=0 // pred_check
    _
  $region15: #{mse_loss.1} parent=0 // pred_check_branch
    %30 = sbr.rel (0) target = $region17
  $region16: #{mse_loss.1} parent=0 // pred_region
    _
  $region17: #{mse_loss.1} parent=0 // pred_fallthru
    _

</llo_original>
